<compile_context>
chip_gen: v7x
topology: tpu7x:2x2x1
jax: 0.10.0
libtpu: 0.0.40
codegen_flags: <defaults>
</compile_context>

<pallas_src>
import functools

import jax
import jax.numpy as jnp
from jax.experimental import pallas as pl
from jax.experimental.pallas import tpu as pltpu

BN_EPS = 1e-5
_LANE = 128


def _conv_bn_relu_kernel(p_ref, w_ref, gamma_ref, beta_ref, out_ref):
    """p_ref:  (rows, K*K*Cin) bf16 im2col patches (built in the wrapper).
    w_ref:  (Cout, K*K*Cin) bf16 flattened conv weight, index (ky, kx, cin).
    gamma_ref / beta_ref: (Cout, 1) f32 BN affine parameters.
    out_ref: (Cout, rows) f32, lane-dense (rows on the 128-lane axis)."""
    rows = p_ref.shape[0]
    cout = w_ref.shape[0]

    # Single MXU contraction over K*K*Cin; result transposed to (Cout, rows)
    # so the lane axis is 128-dense for the epilogue and the final store.
    acc = jax.lax.dot_general(
        w_ref[...], p_ref[...],
        dimension_numbers=(((1,), (1,)), ((), ())),
        preferred_element_type=jnp.float32)              # (Cout, rows) f32

    # BatchNorm2d (training mode) biased batch stats over rows.  Lane-chunked
    # one-pass sum / sum-of-squares: only an 8-vreg (Cout x 128) square temp is
    # live at a time instead of a full-size acc*acc copy next to acc.
    zero = jnp.zeros((cout, 1), jnp.float32)
    s, ss = zero, zero
    start = 0
    while start < rows:                                  # static (trace-time)
        width = min(_LANE, rows - start)
        c = acc[:, start:start + width]
        s = s + jnp.sum(c, axis=1, keepdims=True)
        ss = ss + jnp.sum(c * c, axis=1, keepdims=True)
        start += width

    inv_n = 1.0 / rows
    mean = s * inv_n
    # One-pass variance can go slightly negative from cancellation: clamp.
    var = jnp.maximum(ss * inv_n - mean * mean, 0.0)

    # Fold BN into one per-channel FMA (rsqrt on the tiny (Cout,1) vector).
    scale = gamma_ref[...] * jax.lax.rsqrt(var + BN_EPS)  # (Cout, 1)
    shift = beta_ref[...] - mean * scale                  # (Cout, 1)

    # FMA + ReLU + lane-dense (unmasked) store.
    out_ref[...] = jnp.maximum(acc * scale + shift, 0.0)


def prepare_params(weight, gamma, beta):
    """Constant-parameter prep (hoist out of the per-call path).
    weight: PyTorch layout (Cout, Cin, K, K) -> (Cout, K*K*Cin) bf16 with the
    contraction index ordered (ky, kx, cin) to match the wrapper im2col."""
    Cout, Cin, K, _ = weight.shape
    w_flat = jnp.transpose(weight, (0, 2, 3, 1)).reshape(Cout, K * K * Cin)
    return (w_flat.astype(jnp.bfloat16),
            gamma.reshape(Cout, 1).astype(jnp.float32),
            beta.reshape(Cout, 1).astype(jnp.float32))


def basic_conv2d(x_nchw, w_flat, gamma2d, beta2d, *, kernel_size, stride=1,
                 padding=0, dilation=1):
    """BasicConv2d forward.  x_nchw: (N, Cin, H, W) f32.
    Returns (N, Cout, Hout, Wout) f32."""
    N, Cin, H, W = x_nchw.shape
    Cout = w_flat.shape[0]
    K = kernel_size
    Hout = (H + 2 * padding - dilation * (K - 1) - 1) // stride + 1
    Wout = (W + 2 * padding - dilation * (K - 1) - 1) // stride + 1
    rows = N * Hout * Wout

    # Wrapper-side (XLA-fused) im2col in bf16: NCHW -> NHWC, pad once, take the
    # K*K shifted (dilated, strided) views, concat along the channel axis.
    x = jnp.transpose(x_nchw, (0, 2, 3, 1)).astype(jnp.bfloat16)
    xp = jnp.pad(x, ((0, 0), (padding, padding), (padding, padding), (0, 0)))
    taps = []
    for ky in range(K):
        for kx in range(K):
            h0, w0 = ky * dilation, kx * dilation
            taps.append(xp[:, h0:h0 + (Hout - 1) * stride + 1:stride,
                           w0:w0 + (Wout - 1) * stride + 1:stride, :])
    patches = jnp.concatenate(taps, axis=-1)             # (N, Ho, Wo, K*K*Cin)
    patches = patches.reshape(rows, K * K * Cin)         # leading-dim collapse

    out_t = pl.pallas_call(
        _conv_bn_relu_kernel,
        out_shape=jax.ShapeDtypeStruct((Cout, rows), jnp.float32),
        in_specs=[pl.BlockSpec(memory_space=pltpu.MemorySpace.VMEM)] * 4,
        out_specs=pl.BlockSpec(memory_space=pltpu.MemorySpace.VMEM),
    )(patches, w_flat, gamma2d, beta2d)

    # (Cout, N*Hout*Wout) -> (N, Cout, Hout, Wout)  (XLA glue).
    return jnp.transpose(out_t.reshape(Cout, N, Hout, Wout), (1, 0, 2, 3))


def _reference(x_nchw, weight, gamma, beta, *, stride, padding, dilation):
    """Pure-JAX reference: Conv2d(bias=False) -> BN (batch stats) -> ReLU."""
    y = jax.lax.conv_general_dilated(
        x_nchw, weight, window_strides=(stride, stride),
        padding=[(padding, padding), (padding, padding)],
        rhs_dilation=(dilation, dilation),
        dimension_numbers=("NCHW", "OIHW", "NCHW"),
        precision=jax.lax.Precision.HIGHEST)
    mean = jnp.mean(y, axis=(0, 2, 3), keepdims=True)
    var = jnp.mean((y - mean) ** 2, axis=(0, 2, 3), keepdims=True)
    yn = (y - mean) * jax.lax.rsqrt(var + BN_EPS)
    yn = yn * gamma.reshape(1, -1, 1, 1) + beta.reshape(1, -1, 1, 1)
    return jnp.maximum(yn, 0.0)


if __name__ == "__main__":
    key = jax.random.PRNGKey(0)
    k_x, k_w, k_g, k_b = jax.random.split(key, 4)

    # BasicConv2d(32, 64, kernel_size=3, padding=1) on a (2, 32, 16, 16) input.
    N, Cin, H, W = 2, 32, 16, 16
    Cout, K, pad, dil, stride = 64, 3, 1, 1, 1

    x = jax.random.normal(k_x, (N, Cin, H, W), jnp.float32)
    weight = 0.1 * jax.random.normal(k_w, (Cout, Cin, K, K), jnp.float32)
    gamma = 1.0 + 0.1 * jax.random.normal(k_g, (Cout,), jnp.float32)
    beta = 0.05 * jax.random.normal(k_b, (Cout,), jnp.float32)

    w_flat, gamma2d, beta2d = prepare_params(weight, gamma, beta)

    fwd = jax.jit(functools.partial(basic_conv2d, kernel_size=K, stride=stride,
                                    padding=pad, dilation=dil))
    out = fwd(x, w_flat, gamma2d, beta2d)
    out = jax.block_until_ready(out)

    assert out.shape == (N, Cout, H, W), out.shape
    assert jnp.isfinite(out).all()

    ref = _reference(x, weight, gamma, beta, stride=stride, padding=pad,
                     dilation=dil)
    max_err = float(jnp.max(jnp.abs(out - ref)))
    assert max_err < 1e-1, max_err  # bf16 MXU operands, f32 accumulation

    print("KERNEL_OK")
</pallas_src>

<mosaic_0001>
module attributes {stable_mosaic.version = 11 : i64} {
  func.func @_conv_bn_relu_kernel(%arg0: memref<512x288xbf16, #tpu.memory_space<vmem>>, %arg1: memref<64x288xbf16, #tpu.memory_space<vmem>>, %arg2: memref<64x1xf32, #tpu.memory_space<vmem>>, %arg3: memref<64x1xf32, #tpu.memory_space<vmem>>, %arg4: memref<64x512xf32, #tpu.memory_space<vmem>>) attributes {dimension_semantics = [], scalar_prefetch = 0 : i64, scratch_operands = 0 : i64, tpu.core_type = #tpu.core_type<tc>} {
    %c0 = arith.constant 0 : index
    %c0_0 = arith.constant 0 : index
    %0 = vector.load %arg1[%c0, %c0_0] : memref<64x288xbf16, #tpu.memory_space<vmem>>, vector<64x288xbf16>
    %c0_1 = arith.constant 0 : index
    %c0_2 = arith.constant 0 : index
    %1 = vector.load %arg0[%c0_1, %c0_2] : memref<512x288xbf16, #tpu.memory_space<vmem>>, vector<512x288xbf16>
    %cst = arith.constant dense<0.000000e+00> : vector<64x512xf32>
    %2 = tpu.matmul %0, %1, %cst {dimension_numbers = #tpu.dot_dimension_numbers<[1], [1], [0], [0], [0, 0, 1, 0], [], []>} : vector<64x288xbf16>, vector<512x288xbf16>, vector<64x512xf32> -> vector<64x512xf32>
    %cst_3 = arith.constant 0.000000e+00 : f32
    %3 = vector.broadcast %cst_3 : f32 to vector<64x1xf32>
    %4 = vector.extract_strided_slice %2 {offsets = [0, 0], sizes = [64, 128], strides = [1, 1]} : vector<64x512xf32> to vector<64x128xf32>
    %cst_4 = arith.constant dense<0.000000e+00> : vector<64xf32>
    %5 = vector.multi_reduction <add>, %4, %cst_4 [1] : vector<64x128xf32> to vector<64xf32>
    %6 = vector.shape_cast %5 : vector<64xf32> to vector<64x1xf32>
    %7 = arith.addf %3, %6 : vector<64x1xf32>
    %8 = arith.mulf %4, %4 : vector<64x128xf32>
    %cst_5 = arith.constant dense<0.000000e+00> : vector<64xf32>
    %9 = vector.multi_reduction <add>, %8, %cst_5 [1] : vector<64x128xf32> to vector<64xf32>
    %10 = vector.shape_cast %9 : vector<64xf32> to vector<64x1xf32>
    %11 = arith.addf %3, %10 : vector<64x1xf32>
    %12 = vector.extract_strided_slice %2 {offsets = [0, 128], sizes = [64, 128], strides = [1, 1]} : vector<64x512xf32> to vector<64x128xf32>
    %cst_6 = arith.constant dense<0.000000e+00> : vector<64xf32>
    %13 = vector.multi_reduction <add>, %12, %cst_6 [1] : vector<64x128xf32> to vector<64xf32>
    %14 = vector.shape_cast %13 : vector<64xf32> to vector<64x1xf32>
    %15 = arith.addf %7, %14 : vector<64x1xf32>
    %16 = arith.mulf %12, %12 : vector<64x128xf32>
    %cst_7 = arith.constant dense<0.000000e+00> : vector<64xf32>
    %17 = vector.multi_reduction <add>, %16, %cst_7 [1] : vector<64x128xf32> to vector<64xf32>
    %18 = vector.shape_cast %17 : vector<64xf32> to vector<64x1xf32>
    %19 = arith.addf %11, %18 : vector<64x1xf32>
    %20 = vector.extract_strided_slice %2 {offsets = [0, 256], sizes = [64, 128], strides = [1, 1]} : vector<64x512xf32> to vector<64x128xf32>
    %cst_8 = arith.constant dense<0.000000e+00> : vector<64xf32>
    %21 = vector.multi_reduction <add>, %20, %cst_8 [1] : vector<64x128xf32> to vector<64xf32>
    %22 = vector.shape_cast %21 : vector<64xf32> to vector<64x1xf32>
    %23 = arith.addf %15, %22 : vector<64x1xf32>
    %24 = arith.mulf %20, %20 : vector<64x128xf32>
    %cst_9 = arith.constant dense<0.000000e+00> : vector<64xf32>
    %25 = vector.multi_reduction <add>, %24, %cst_9 [1] : vector<64x128xf32> to vector<64xf32>
    %26 = vector.shape_cast %25 : vector<64xf32> to vector<64x1xf32>
    %27 = arith.addf %19, %26 : vector<64x1xf32>
    %28 = vector.extract_strided_slice %2 {offsets = [0, 384], sizes = [64, 128], strides = [1, 1]} : vector<64x512xf32> to vector<64x128xf32>
    %cst_10 = arith.constant dense<0.000000e+00> : vector<64xf32>
    %29 = vector.multi_reduction <add>, %28, %cst_10 [1] : vector<64x128xf32> to vector<64xf32>
    %30 = vector.shape_cast %29 : vector<64xf32> to vector<64x1xf32>
    %31 = arith.addf %23, %30 : vector<64x1xf32>
    %32 = arith.mulf %28, %28 : vector<64x128xf32>
    %cst_11 = arith.constant dense<0.000000e+00> : vector<64xf32>
    %33 = vector.multi_reduction <add>, %32, %cst_11 [1] : vector<64x128xf32> to vector<64xf32>
    %34 = vector.shape_cast %33 : vector<64xf32> to vector<64x1xf32>
    %35 = arith.addf %27, %34 : vector<64x1xf32>
    %cst_12 = arith.constant 0.001953125 : f32
    %36 = vector.broadcast %cst_12 : f32 to vector<64x1xf32>
    %37 = arith.mulf %31, %36 : vector<64x1xf32>
    %cst_13 = arith.constant 0.001953125 : f32
    %38 = vector.broadcast %cst_13 : f32 to vector<64x1xf32>
    %39 = arith.mulf %35, %38 : vector<64x1xf32>
    %40 = arith.mulf %37, %37 : vector<64x1xf32>
    %41 = arith.subf %39, %40 : vector<64x1xf32>
    %cst_14 = arith.constant 0.000000e+00 : f32
    %42 = vector.broadcast %cst_14 : f32 to vector<64x1xf32>
    %43 = arith.maximumf %41, %42 : vector<64x1xf32>
    %c0_15 = arith.constant 0 : index
    %c0_16 = arith.constant 0 : index
    %44 = vector.load %arg2[%c0_15, %c0_16] : memref<64x1xf32, #tpu.memory_space<vmem>>, vector<64x1xf32>
    %cst_17 = arith.constant 9.99999974E-6 : f32
    %45 = vector.broadcast %cst_17 : f32 to vector<64x1xf32>
    %46 = arith.addf %43, %45 : vector<64x1xf32>
    %47 = math.rsqrt %46 : vector<64x1xf32>
    %48 = arith.mulf %44, %47 : vector<64x1xf32>
    %c0_18 = arith.constant 0 : index
    %c0_19 = arith.constant 0 : index
    %49 = vector.load %arg3[%c0_18, %c0_19] : memref<64x1xf32, #tpu.memory_space<vmem>>, vector<64x1xf32>
    %50 = arith.mulf %37, %48 : vector<64x1xf32>
    %51 = arith.subf %49, %50 : vector<64x1xf32>
    %52 = vector.broadcast %48 : vector<64x1xf32> to vector<64x512xf32>
    %53 = arith.mulf %2, %52 : vector<64x512xf32>
    %54 = vector.broadcast %51 : vector<64x1xf32> to vector<64x512xf32>
    %55 = arith.addf %53, %54 : vector<64x512xf32>
    %cst_20 = arith.constant 0.000000e+00 : f32
    %56 = vector.broadcast %cst_20 : f32 to vector<64x512xf32>
    %57 = arith.maximumf %55, %56 : vector<64x512xf32>
    %c0_21 = arith.constant 0 : index
    %c0_22 = arith.constant 0 : index
    %58 = vector.load %arg4[%c0_21, %c0_22] : memref<64x512xf32, #tpu.memory_space<vmem>>, vector<64x512xf32>
    tpu.vector_store %arg4[%c0_21, %c0_22], %57 {strides = array<i32>} : memref<64x512xf32, #tpu.memory_space<vmem>>, vector<64x512xf32>,
    return
  }
}

</mosaic_0001>

<llo_original>
// kernel: basic_conv2d.1
$region0: #{basic_conv2d.1}
  #allocation0 [shape = 'u32[]', space=smem, size = 0x4, offset = 0x4, fixed_abs, tag = 'smem constant byte address 0x4 - core index']
  #allocation1 [shape = 'u32[144,128]{1,0:T(1,128)}', space=vmem, size = 0x12000, scoped, tag = 'internal scratch']
  %s0 = inlined_call_operand.vmem [shape: bf16[512,288], index: 0, kind: input, shape index: {}]
  %s1 = inlined_call_operand.vmem [shape: bf16[64,288], index: 1, kind: input, shape index: {}]
  %s2 = inlined_call_operand.vmem [shape: f32[64,1], index: 2, kind: input, shape index: {}]
  %s3 = inlined_call_operand.vmem [shape: f32[64,1], index: 3, kind: input, shape index: {}]
  %s4 = inlined_call_operand.vmem [shape: f32[64,512], index: 4, kind: output, shape index: {}]
  %s5 = sld [smem:[#allocation0]]
  $region26: #{basic_conv2d.1} parent=0
    _
  %s7 = ssub.s32 1, %s5
  %s8 = scalar_select 0, %s7, %s5
  // Predicated region
  $region2: #{basic_conv2d.1} parent=0 // pred_check
    _
  $region3: #{basic_conv2d.1} parent=0 // pred_check_branch
    %10 = sbr.rel (0) target = $region5
  $region4: #{basic_conv2d.1} parent=0 // pred_region
    _
  $region5: #{basic_conv2d.1} parent=0 // pred_fallthru
    _
  // Predicated region
  $region6: #{basic_conv2d.1} parent=0 // pred_check
    _
  $region7: #{basic_conv2d.1} parent=0 // pred_check_branch
    %12 = sbr.rel (0) target = $region9
  $region8: #{basic_conv2d.1} parent=0 // pred_region
    _
  $region9: #{basic_conv2d.1} parent=0 // pred_fallthru
    _
  // Predicated region
  $region10: #{basic_conv2d.1} parent=0 // pred_check
    _
  $region11: #{basic_conv2d.1} parent=0 // pred_check_branch
    %14 = sbr.rel (0) target = $region13
  $region12: #{basic_conv2d.1} parent=0 // pred_region
    _
  $region13: #{basic_conv2d.1} parent=0 // pred_fallthru
    _
  // Predicated region
  $region14: #{basic_conv2d.1} parent=0 // pred_check
    _
  $region15: #{basic_conv2d.1} parent=0 // pred_check_branch
    %16 = sbr.rel (0) target = $region17
  $region16: #{basic_conv2d.1} parent=0 // pred_region
    _
  $region17: #{basic_conv2d.1} parent=0 // pred_fallthru
    _
  %v18 = vld [vmem:[%s1] sm:$0xff]
  %v19 = vld [vmem:[%s1 + $0x8] sm:$0xf]
  %v20 = vld [vmem:[%s1 + $0xc] sm:$0xff]
  %v21 = vld [vmem:[%s1 + $0x14] sm:$0xf]
  %v22 = vld [vmem:[%s1 + $0x18] sm:$0xff]
  %v23 = vld [vmem:[%s1 + $0x20] sm:$0xf]
  %v24 = vld [vmem:[%s1 + $0x24] sm:$0xff]
  %v25 = vld [vmem:[%s1 + $0x2c] sm:$0xf]
  %v26 = vld [vmem:[%s1 + $0x30] sm:$0xff]
  %v27 = vld [vmem:[%s1 + $0x38] sm:$0xf]
  %v28 = vld [vmem:[%s1 + $0x3c] sm:$0xff]
  %v29 = vld [vmem:[%s1 + $0x44] sm:$0xf]
  %v30 = vld [vmem:[%s1 + $0x48] sm:$0xff]
  %v31 = vld [vmem:[%s1 + $0x50] sm:$0xf]
  %v32 = vld [vmem:[%s1 + $0x54] sm:$0xff]
  %v33 = vld [vmem:[%s1 + $0x5c] sm:$0xf]
  %v34 = vld [vmem:[%s0] sm:$0xff]
  %v35 = vld [vmem:[%s0 + $0x8] sm:$0xf]
  %v36 = vld [vmem:[%s0 + $0xc] sm:$0xff]
  %v37 = vld [vmem:[%s0 + $0x14] sm:$0xf]
  %v38 = vld [vmem:[%s0 + $0x18] sm:$0xff]
  %v39 = vld [vmem:[%s0 + $0x20] sm:$0xf]
  %v40 = vld [vmem:[%s0 + $0x24] sm:$0xff]
  %v41 = vld [vmem:[%s0 + $0x2c] sm:$0xf]
  %v42 = vld [vmem:[%s0 + $0x30] sm:$0xff]
  %v43 = vld [vmem:[%s0 + $0x38] sm:$0xf]
  %v44 = vld [vmem:[%s0 + $0x3c] sm:$0xff]
  %v45 = vld [vmem:[%s0 + $0x44] sm:$0xf]
  %v46 = vld [vmem:[%s0 + $0x48] sm:$0xff]
  %v47 = vld [vmem:[%s0 + $0x50] sm:$0xf]
  %v48 = vld [vmem:[%s0 + $0x54] sm:$0xff]
  %v49 = vld [vmem:[%s0 + $0x5c] sm:$0xf]
  %v50 = vld [vmem:[%s0 + $0x60] sm:$0xff]
  %v51 = vld [vmem:[%s0 + $0x68] sm:$0xf]
  %v52 = vld [vmem:[%s0 + $0x6c] sm:$0xff]
  %v53 = vld [vmem:[%s0 + $0x74] sm:$0xf]
  %v54 = vld [vmem:[%s0 + $0x78] sm:$0xff]
  %v55 = vld [vmem:[%s0 + $0x80] sm:$0xf]
  %v56 = vld [vmem:[%s0 + $0x84] sm:$0xff]
  %v57 = vld [vmem:[%s0 + $0x8c] sm:$0xf]
  %v58 = vld [vmem:[%s0 + $0x90] sm:$0xff]
  %v59 = vld [vmem:[%s0 + $0x98] sm:$0xf]
  %v60 = vld [vmem:[%s0 + $0x9c] sm:$0xff]
  %v61 = vld [vmem:[%s0 + $0xa4] sm:$0xf]
  %v62 = vld [vmem:[%s0 + $0xa8] sm:$0xff]
  %v63 = vld [vmem:[%s0 + $0xb0] sm:$0xf]
  %v64 = vld [vmem:[%s0 + $0xb4] sm:$0xff]
  %v65 = vld [vmem:[%s0 + $0xbc] sm:$0xf]
  %v66 = vld [vmem:[%s0 + $0xc0] sm:$0xff]
  %v67 = vld [vmem:[%s0 + $0xc8] sm:$0xf]
  %v68 = vld [vmem:[%s0 + $0xcc] sm:$0xff]
  %v69 = vld [vmem:[%s0 + $0xd4] sm:$0xf]
  %v70 = vld [vmem:[%s0 + $0xd8] sm:$0xff]
  %v71 = vld [vmem:[%s0 + $0xe0] sm:$0xf]
  %v72 = vld [vmem:[%s0 + $0xe4] sm:$0xff]
  %v73 = vld [vmem:[%s0 + $0xec] sm:$0xf]
  %v74 = vld [vmem:[%s0 + $0xf0] sm:$0xff]
  %v75 = vld [vmem:[%s0 + $0xf8] sm:$0xf]
  %v76 = vld [vmem:[%s0 + $0xfc] sm:$0xff]
  %v77 = vld [vmem:[%s0 + $0x104] sm:$0xf]
  %v78 = vld [vmem:[%s0 + $0x108] sm:$0xff]
  %v79 = vld [vmem:[%s0 + $0x110] sm:$0xf]
  %v80 = vld [vmem:[%s0 + $0x114] sm:$0xff]
  %v81 = vld [vmem:[%s0 + $0x11c] sm:$0xf]
  %v82 = vld [vmem:[%s0 + $0x120] sm:$0xff]
  %v83 = vld [vmem:[%s0 + $0x128] sm:$0xf]
  %v84 = vld [vmem:[%s0 + $0x12c] sm:$0xff]
  %v85 = vld [vmem:[%s0 + $0x134] sm:$0xf]
  %v86 = vld [vmem:[%s0 + $0x138] sm:$0xff]
  %v87 = vld [vmem:[%s0 + $0x140] sm:$0xf]
  %v88 = vld [vmem:[%s0 + $0x144] sm:$0xff]
  %v89 = vld [vmem:[%s0 + $0x14c] sm:$0xf]
  %v90 = vld [vmem:[%s0 + $0x150] sm:$0xff]
  %v91 = vld [vmem:[%s0 + $0x158] sm:$0xf]
  %v92 = vld [vmem:[%s0 + $0x15c] sm:$0xff]
  %v93 = vld [vmem:[%s0 + $0x164] sm:$0xf]
  %v94 = vld [vmem:[%s0 + $0x168] sm:$0xff]
  %v95 = vld [vmem:[%s0 + $0x170] sm:$0xf]
  %v96 = vld [vmem:[%s0 + $0x174] sm:$0xff]
  %v97 = vld [vmem:[%s0 + $0x17c] sm:$0xf]
  %v98 = vld [vmem:[%s0 + $0x180] sm:$0xff]
  %v99 = vld [vmem:[%s0 + $0x188] sm:$0xf]
  %v100 = vld [vmem:[%s0 + $0x18c] sm:$0xff]
  %v101 = vld [vmem:[%s0 + $0x194] sm:$0xf]
  %v102 = vld [vmem:[%s0 + $0x198] sm:$0xff]
  %v103 = vld [vmem:[%s0 + $0x1a0] sm:$0xf]
  %v104 = vld [vmem:[%s0 + $0x1a4] sm:$0xff]
  %v105 = vld [vmem:[%s0 + $0x1ac] sm:$0xf]
  %v106 = vld [vmem:[%s0 + $0x1b0] sm:$0xff]
  %v107 = vld [vmem:[%s0 + $0x1b8] sm:$0xf]
  %v108 = vld [vmem:[%s0 + $0x1bc] sm:$0xff]
  %v109 = vld [vmem:[%s0 + $0x1c4] sm:$0xf]
  %v110 = vld [vmem:[%s0 + $0x1c8] sm:$0xff]
  %v111 = vld [vmem:[%s0 + $0x1d0] sm:$0xf]
  %v112 = vld [vmem:[%s0 + $0x1d4] sm:$0xff]
  %v113 = vld [vmem:[%s0 + $0x1dc] sm:$0xf]
  %v114 = vld [vmem:[%s0 + $0x1e0] sm:$0xff]
  %v115 = vld [vmem:[%s0 + $0x1e8] sm:$0xf]
  %v116 = vld [vmem:[%s0 + $0x1ec] sm:$0xff]
  %v117 = vld [vmem:[%s0 + $0x1f4] sm:$0xf]
  %v118 = vld [vmem:[%s0 + $0x1f8] sm:$0xff]
  %v119 = vld [vmem:[%s0 + $0x200] sm:$0xf]
  %v120 = vld [vmem:[%s0 + $0x204] sm:$0xff]
  %v121 = vld [vmem:[%s0 + $0x20c] sm:$0xf]
  %v122 = vld [vmem:[%s0 + $0x210] sm:$0xff]
  %v123 = vld [vmem:[%s0 + $0x218] sm:$0xf]
  %v124 = vld [vmem:[%s0 + $0x21c] sm:$0xff]
  %v125 = vld [vmem:[%s0 + $0x224] sm:$0xf]
  %v126 = vld [vmem:[%s0 + $0x228] sm:$0xff]
  %v127 = vld [vmem:[%s0 + $0x230] sm:$0xf]
  %v128 = vld [vmem:[%s0 + $0x234] sm:$0xff]
  %v129 = vld [vmem:[%s0 + $0x23c] sm:$0xf]
  %v130 = vld [vmem:[%s0 + $0x240] sm:$0xff]
  %v131 = vld [vmem:[%s0 + $0x248] sm:$0xf]
  %v132 = vld [vmem:[%s0 + $0x24c] sm:$0xff]
  %v133 = vld [vmem:[%s0 + $0x254] sm:$0xf]
  %v134 = vld [vmem:[%s0 + $0x258] sm:$0xff]
  %v135 = vld [vmem:[%s0 + $0x260] sm:$0xf]
  %v136 = vld [vmem:[%s0 + $0x264] sm:$0xff]
  %v137 = vld [vmem:[%s0 + $0x26c] sm:$0xf]
  %v138 = vld [vmem:[%s0 + $0x270] sm:$0xff]
  %v139 = vld [vmem:[%s0 + $0x278] sm:$0xf]
  %v140 = vld [vmem:[%s0 + $0x27c] sm:$0xff]
  %v141 = vld [vmem:[%s0 + $0x284] sm:$0xf]
  %v142 = vld [vmem:[%s0 + $0x288] sm:$0xff]
  %v143 = vld [vmem:[%s0 + $0x290] sm:$0xf]
  %v144 = vld [vmem:[%s0 + $0x294] sm:$0xff]
  %v145 = vld [vmem:[%s0 + $0x29c] sm:$0xf]
  %v146 = vld [vmem:[%s0 + $0x2a0] sm:$0xff]
  %v147 = vld [vmem:[%s0 + $0x2a8] sm:$0xf]
  %v148 = vld [vmem:[%s0 + $0x2ac] sm:$0xff]
  %v149 = vld [vmem:[%s0 + $0x2b4] sm:$0xf]
  %v150 = vld [vmem:[%s0 + $0x2b8] sm:$0xff]
  %v151 = vld [vmem:[%s0 + $0x2c0] sm:$0xf]
  %v152 = vld [vmem:[%s0 + $0x2c4] sm:$0xff]
  %v153 = vld [vmem:[%s0 + $0x2cc] sm:$0xf]
  %v154 = vld [vmem:[%s0 + $0x2d0] sm:$0xff]
  %v155 = vld [vmem:[%s0 + $0x2d8] sm:$0xf]
  %v156 = vld [vmem:[%s0 + $0x2dc] sm:$0xff]
  %v157 = vld [vmem:[%s0 + $0x2e4] sm:$0xf]
  %v158 = vld [vmem:[%s0 + $0x2e8] sm:$0xff]
  %v159 = vld [vmem:[%s0 + $0x2f0] sm:$0xf]
  %v160 = vld [vmem:[%s0 + $0x2f4] sm:$0xff]
  %v161 = vld [vmem:[%s0 + $0x2fc] sm:$0xf]
  %v178 = vunpack.c.l.b16 %v18
  %v179 = vunpack.c.h.b16 %v18
  %v180 = vunpack.c.l.b16 %v19
  %v181 = vunpack.c.l.b16 %v20
  %v182 = vunpack.c.h.b16 %v20
  %v183 = vunpack.c.l.b16 %v21
  %v184 = vunpack.c.l.b16 %v22
  %v185 = vunpack.c.h.b16 %v22
  %v186 = vunpack.c.l.b16 %v23
  %v187 = vunpack.c.l.b16 %v24
  %v188 = vunpack.c.h.b16 %v24
  %v189 = vunpack.c.l.b16 %v25
  %v190 = vunpack.c.l.b16 %v26
  %v191 = vunpack.c.h.b16 %v26
  %v192 = vunpack.c.l.b16 %v27
  %v193 = vunpack.c.l.b16 %v28
  %v194 = vunpack.c.h.b16 %v28
  %v195 = vunpack.c.l.b16 %v29
  %v196 = vunpack.c.l.b16 %v30
  %v197 = vunpack.c.h.b16 %v30
  %v198 = vunpack.c.l.b16 %v31
  %v199 = vunpack.c.l.b16 %v32
  %v200 = vunpack.c.h.b16 %v32
  %v201 = vunpack.c.l.b16 %v33
  %v202 = vpack.c.b16 %v181, %v178
  %v203 = vpack.c.b16 %v182, %v179
  %v204 = vpack.c.b16 %v183, %v180
  %v205 = vpack.c.b16 %v187, %v184
  %v206 = vpack.c.b16 %v188, %v185
  %v207 = vpack.c.b16 %v189, %v186
  %v208 = vpack.c.b16 %v193, %v190
  %v209 = vpack.c.b16 %v194, %v191
  %v210 = vpack.c.b16 %v195, %v192
  %v211 = vpack.c.b16 %v199, %v196
  %v212 = vpack.c.b16 %v200, %v197
  %v213 = vpack.c.b16 %v201, %v198
  %v350 = vunpack.c.l.b16 %v34
  %v351 = vunpack.c.h.b16 %v34
  %v352 = vunpack.c.l.b16 %v35
  %v353 = vunpack.c.l.b16 %v36
  %v354 = vunpack.c.h.b16 %v36
  %v355 = vunpack.c.l.b16 %v37
  %v356 = vunpack.c.l.b16 %v38
  %v357 = vunpack.c.h.b16 %v38
  %v358 = vunpack.c.l.b16 %v39
  %v359 = vunpack.c.l.b16 %v40
  %v360 = vunpack.c.h.b16 %v40
  %v361 = vunpack.c.l.b16 %v41
  %v362 = vunpack.c.l.b16 %v42
  %v363 = vunpack.c.h.b16 %v42
  %v364 = vunpack.c.l.b16 %v43
  %v365 = vunpack.c.l.b16 %v44
  %v366 = vunpack.c.h.b16 %v44
  %v367 = vunpack.c.l.b16 %v45
  %v368 = vunpack.c.l.b16 %v46
  %v369 = vunpack.c.h.b16 %v46
  %v370 = vunpack.c.l.b16 %v47
  %v371 = vunpack.c.l.b16 %v48
  %v372 = vunpack.c.h.b16 %v48
  %v373 = vunpack.c.l.b16 %v49
  %v374 = vunpack.c.l.b16 %v50
  %v375 = vunpack.c.h.b16 %v50
  %v376 = vunpack.c.l.b16 %v51
  %v377 = vunpack.c.l.b16 %v52
  %v378 = vunpack.c.h.b16 %v52
  %v379 = vunpack.c.l.b16 %v53
  %v380 = vunpack.c.l.b16 %v54
  %v381 = vunpack.c.h.b16 %v54
  %v382 = vunpack.c.l.b16 %v55
  %v383 = vunpack.c.l.b16 %v56
  %v384 = vunpack.c.h.b16 %v56
  %v385 = vunpack.c.l.b16 %v57
  %v386 = vunpack.c.l.b16 %v58
  %v387 = vunpack.c.h.b16 %v58
  %v388 = vunpack.c.l.b16 %v59
  %v389 = vunpack.c.l.b16 %v60
  %v390 = vunpack.c.h.b16 %v60
  %v391 = vunpack.c.l.b16 %v61
  %v392 = vunpack.c.l.b16 %v62
  %v393 = vunpack.c.h.b16 %v62
  %v394 = vunpack.c.l.b16 %v63
  %v395 = vunpack.c.l.b16 %v64
  %v396 = vunpack.c.h.b16 %v64
  %v397 = vunpack.c.l.b16 %v65
  %v398 = vunpack.c.l.b16 %v66
  %v399 = vunpack.c.h.b16 %v66
  %v400 = vunpack.c.l.b16 %v67
  %v401 = vunpack.c.l.b16 %v68
  %v402 = vunpack.c.h.b16 %v68
  %v403 = vunpack.c.l.b16 %v69
  %v404 = vunpack.c.l.b16 %v70
  %v405 = vunpack.c.h.b16 %v70
  %v406 = vunpack.c.l.b16 %v71
  %v407 = vunpack.c.l.b16 %v72
  %v408 = vunpack.c.h.b16 %v72
  %v409 = vunpack.c.l.b16 %v73
  %v410 = vunpack.c.l.b16 %v74
  %v411 = vunpack.c.h.b16 %v74
  %v412 = vunpack.c.l.b16 %v75
  %v413 = vunpack.c.l.b16 %v76
  %v414 = vunpack.c.h.b16 %v76
  %v415 = vunpack.c.l.b16 %v77
  %v416 = vunpack.c.l.b16 %v78
  %v417 = vunpack.c.h.b16 %v78
  %v418 = vunpack.c.l.b16 %v79
  %v419 = vunpack.c.l.b16 %v80
  %v420 = vunpack.c.h.b16 %v80
  %v421 = vunpack.c.l.b16 %v81
  %v422 = vunpack.c.l.b16 %v82
  %v423 = vunpack.c.h.b16 %v82
  %v424 = vunpack.c.l.b16 %v83
  %v425 = vunpack.c.l.b16 %v84
  %v426 = vunpack.c.h.b16 %v84
  %v427 = vunpack.c.l.b16 %v85
  %v428 = vunpack.c.l.b16 %v86
  %v429 = vunpack.c.h.b16 %v86
  %v430 = vunpack.c.l.b16 %v87
  %v431 = vunpack.c.l.b16 %v88
  %v432 = vunpack.c.h.b16 %v88
  %v433 = vunpack.c.l.b16 %v89
  %v434 = vunpack.c.l.b16 %v90
  %v435 = vunpack.c.h.b16 %v90
  %v436 = vunpack.c.l.b16 %v91
  %v437 = vunpack.c.l.b16 %v92
  %v438 = vunpack.c.h.b16 %v92
  %v439 = vunpack.c.l.b16 %v93
  %v440 = vunpack.c.l.b16 %v94
  %v441 = vunpack.c.h.b16 %v94
  %v442 = vunpack.c.l.b16 %v95
  %v443 = vunpack.c.l.b16 %v96
  %v444 = vunpack.c.h.b16 %v96
  %v445 = vunpack.c.l.b16 %v97
  %v446 = vunpack.c.l.b16 %v98
  %v447 = vunpack.c.h.b16 %v98
  %v448 = vunpack.c.l.b16 %v99
  %v449 = vunpack.c.l.b16 %v100
  %v450 = vunpack.c.h.b16 %v100
  %v451 = vunpack.c.l.b16 %v101
  %v452 = vunpack.c.l.b16 %v102
  %v453 = vunpack.c.h.b16 %v102
  %v454 = vunpack.c.l.b16 %v103
  %v455 = vunpack.c.l.b16 %v104
  %v456 = vunpack.c.h.b16 %v104
  %v457 = vunpack.c.l.b16 %v105
  %v458 = vunpack.c.l.b16 %v106
  %v459 = vunpack.c.h.b16 %v106
  %v460 = vunpack.c.l.b16 %v107
  %v461 = vunpack.c.l.b16 %v108
  %v462 = vunpack.c.h.b16 %v108
  %v463 = vunpack.c.l.b16 %v109
  %v464 = vunpack.c.l.b16 %v110
  %v465 = vunpack.c.h.b16 %v110
  %v466 = vunpack.c.l.b16 %v111
  %v467 = vunpack.c.l.b16 %v112
  %v468 = vunpack.c.h.b16 %v112
  %v469 = vunpack.c.l.b16 %v113
  %v470 = vunpack.c.l.b16 %v114
  %v471 = vunpack.c.h.b16 %v114
  %v472 = vunpack.c.l.b16 %v115
  %v473 = vunpack.c.l.b16 %v116
  %v474 = vunpack.c.h.b16 %v116
  %v475 = vunpack.c.l.b16 %v117
  %v476 = vunpack.c.l.b16 %v118
  %v477 = vunpack.c.h.b16 %v118
  %v478 = vunpack.c.l.b16 %v119
  %v479 = vunpack.c.l.b16 %v120
  %v480 = vunpack.c.h.b16 %v120
  %v481 = vunpack.c.l.b16 %v121
  %v482 = vunpack.c.l.b16 %v122
  %v483 = vunpack.c.h.b16 %v122
  %v484 = vunpack.c.l.b16 %v123
  %v485 = vunpack.c.l.b16 %v124
  %v486 = vunpack.c.h.b16 %v124
  %v487 = vunpack.c.l.b16 %v125
  %v488 = vunpack.c.l.b16 %v126
  %v489 = vunpack.c.h.b16 %v126
  %v490 = vunpack.c.l.b16 %v127
  %v491 = vunpack.c.l.b16 %v128
  %v492 = vunpack.c.h.b16 %v128
  %v493 = vunpack.c.l.b16 %v129
  %v494 = vunpack.c.l.b16 %v130
  %v495 = vunpack.c.h.b16 %v130
  %v496 = vunpack.c.l.b16 %v131
  %v497 = vunpack.c.l.b16 %v132
  %v498 = vunpack.c.h.b16 %v132
  %v499 = vunpack.c.l.b16 %v133
  %v500 = vunpack.c.l.b16 %v134
  %v501 = vunpack.c.h.b16 %v134
  %v502 = vunpack.c.l.b16 %v135
  %v503 = vunpack.c.l.b16 %v136
  %v504 = vunpack.c.h.b16 %v136
  %v505 = vunpack.c.l.b16 %v137
  %v506 = vunpack.c.l.b16 %v138
  %v507 = vunpack.c.h.b16 %v138
  %v508 = vunpack.c.l.b16 %v139
  %v509 = vunpack.c.l.b16 %v140
  %v510 = vunpack.c.h.b16 %v140
  %v511 = vunpack.c.l.b16 %v141
  %v512 = vunpack.c.l.b16 %v142
  %v513 = vunpack.c.h.b16 %v142
  %v514 = vunpack.c.l.b16 %v143
  %v515 = vunpack.c.l.b16 %v144
  %v516 = vunpack.c.h.b16 %v144
  %v517 = vunpack.c.l.b16 %v145
  %v518 = vunpack.c.l.b16 %v146
  %v519 = vunpack.c.h.b16 %v146
  %v520 = vunpack.c.l.b16 %v147
  %v521 = vunpack.c.l.b16 %v148
  %v522 = vunpack.c.h.b16 %v148
  %v523 = vunpack.c.l.b16 %v149
  %v524 = vunpack.c.l.b16 %v150
  %v525 = vunpack.c.h.b16 %v150
  %v526 = vunpack.c.l.b16 %v151
  %v527 = vunpack.c.l.b16 %v152
  %v528 = vunpack.c.h.b16 %v152
  %v529 = vunpack.c.l.b16 %v153
  %v530 = vunpack.c.l.b16 %v154
  %v531 = vunpack.c.h.b16 %v154
  %v532 = vunpack.c.l.b16 %v155
  %v533 = vunpack.c.l.b16 %v156
  %v534 = vunpack.c.h.b16 %v156
  %v535 = vunpack.c.l.b16 %v157
  %v536 = vunpack.c.l.b16 %v158
  %v537 = vunpack.c.h.b16 %v158
  %v538 = vunpack.c.l.b16 %v159
  %v539 = vunpack.c.l.b16 %v160
  %v540 = vunpack.c.h.b16 %v160
  %v541 = vunpack.c.l.b16 %v161
  %v542 = vpack.c.b16 %v353, %v350
  %v543 = vpack.c.b16 %v354, %v351
  %v544 = vpack.c.b16 %v355, %v352
  %v545 = vpack.c.b16 %v359, %v356
  %v546 = vpack.c.b16 %v360, %v357
  %v547 = vpack.c.b16 %v361, %v358
  %v548 = vpack.c.b16 %v365, %v362
  %v549 = vpack.c.b16 %v366, %v363
  %v550 = vpack.c.b16 %v367, %v364
  %v551 = vpack.c.b16 %v371, %v368
  %v552 = vpack.c.b16 %v372, %v369
  %v553 = vpack.c.b16 %v373, %v370
  %v554 = vpack.c.b16 %v377, %v374
  %v555 = vpack.c.b16 %v378, %v375
  %v556 = vpack.c.b16 %v379, %v376
  %v557 = vpack.c.b16 %v383, %v380
  %v558 = vpack.c.b16 %v384, %v381
  %v559 = vpack.c.b16 %v385, %v382
  %v560 = vpack.c.b16 %v389, %v386
  %v561 = vpack.c.b16 %v390, %v387
  %v562 = vpack.c.b16 %v391, %v388
  %v563 = vpack.c.b16 %v395, %v392
  %v564 = vpack.c.b16 %v396, %v393
  %v565 = vpack.c.b16 %v397, %v394
  %v566 = vpack.c.b16 %v401, %v398
  %v567 = vpack.c.b16 %v402, %v399
  %v568 = vpack.c.b16 %v403, %v400
  %v569 = vpack.c.b16 %v407, %v404
  %v570 = vpack.c.b16 %v408, %v405
  %v571 = vpack.c.b16 %v409, %v406
  %v572 = vpack.c.b16 %v413, %v410
  %v573 = vpack.c.b16 %v414, %v411
  %v574 = vpack.c.b16 %v415, %v412
  %v575 = vpack.c.b16 %v419, %v416
  %v576 = vpack.c.b16 %v420, %v417
  %v577 = vpack.c.b16 %v421, %v418
  %v578 = vpack.c.b16 %v425, %v422
  %v579 = vpack.c.b16 %v426, %v423
  %v580 = vpack.c.b16 %v427, %v424
  %v581 = vpack.c.b16 %v431, %v428
  %v582 = vpack.c.b16 %v432, %v429
  %v583 = vpack.c.b16 %v433, %v430
  %v584 = vpack.c.b16 %v437, %v434
  %v585 = vpack.c.b16 %v438, %v435
  %v586 = vpack.c.b16 %v439, %v436
  %v587 = vpack.c.b16 %v443, %v440
  %v588 = vpack.c.b16 %v444, %v441
  %v589 = vpack.c.b16 %v445, %v442
  %v590 = vpack.c.b16 %v449, %v446
  %v591 = vpack.c.b16 %v450, %v447
  %v592 = vpack.c.b16 %v451, %v448
  %v593 = vpack.c.b16 %v455, %v452
  %v594 = vpack.c.b16 %v456, %v453
  %v595 = vpack.c.b16 %v457, %v454
  %v596 = vpack.c.b16 %v461, %v458
  %v597 = vpack.c.b16 %v462, %v459
  %v598 = vpack.c.b16 %v463, %v460
  %v599 = vpack.c.b16 %v467, %v464
  %v600 = vpack.c.b16 %v468, %v465
  %v601 = vpack.c.b16 %v469, %v466
  %v602 = vpack.c.b16 %v473, %v470
  %v603 = vpack.c.b16 %v474, %v471
  %v604 = vpack.c.b16 %v475, %v472
  %v605 = vpack.c.b16 %v479, %v476
  %v606 = vpack.c.b16 %v480, %v477
  %v607 = vpack.c.b16 %v481, %v478
  %v608 = vpack.c.b16 %v485, %v482
  %v609 = vpack.c.b16 %v486, %v483
  %v610 = vpack.c.b16 %v487, %v484
  %v611 = vpack.c.b16 %v491, %v488
  %v612 = vpack.c.b16 %v492, %v489
  %v613 = vpack.c.b16 %v493, %v490
  %v614 = vpack.c.b16 %v497, %v494
  %v615 = vpack.c.b16 %v498, %v495
  %v616 = vpack.c.b16 %v499, %v496
  %v617 = vpack.c.b16 %v503, %v500
  %v618 = vpack.c.b16 %v504, %v501
  %v619 = vpack.c.b16 %v505, %v502
  %v620 = vpack.c.b16 %v509, %v506
  %v621 = vpack.c.b16 %v510, %v507
  %v622 = vpack.c.b16 %v511, %v508
  %v623 = vpack.c.b16 %v515, %v512
  %v624 = vpack.c.b16 %v516, %v513
  %v625 = vpack.c.b16 %v517, %v514
  %v626 = vpack.c.b16 %v521, %v518
  %v627 = vpack.c.b16 %v522, %v519
  %v628 = vpack.c.b16 %v523, %v520
  %v629 = vpack.c.b16 %v527, %v524
  %v630 = vpack.c.b16 %v528, %v525
  %v631 = vpack.c.b16 %v529, %v526
  %v632 = vpack.c.b16 %v533, %v530
  %v633 = vpack.c.b16 %v534, %v531
  %v634 = vpack.c.b16 %v535, %v532
  %v635 = vpack.c.b16 %v539, %v536
  %v636 = vpack.c.b16 %v540, %v537
  %v637 = vpack.c.b16 %v541, %v538
  %vm702 = vcmask 261120
  %v704 = vsel %vm702, %v204, 0
  %v707 = vsel %vm702, %v207, 0
  %v710 = vsel %vm702, %v210, 0
  %v713 = vsel %vm702, %v213, 0
  %v716 = vsel %vm702, %v544, 0
  %v719 = vsel %vm702, %v547, 0
  %v722 = vsel %vm702, %v550, 0
  %v725 = vsel %vm702, %v553, 0
  %v728 = vsel %vm702, %v556, 0
  %v731 = vsel %vm702, %v559, 0
  %v734 = vsel %vm702, %v562, 0
  %v737 = vsel %vm702, %v565, 0
  %v740 = vsel %vm702, %v568, 0
  %v743 = vsel %vm702, %v571, 0
  %v746 = vsel %vm702, %v574, 0
  %v749 = vsel %vm702, %v577, 0
  %v752 = vsel %vm702, %v580, 0
  %v755 = vsel %vm702, %v583, 0
  %v758 = vsel %vm702, %v586, 0
  %v761 = vsel %vm702, %v589, 0
  %v764 = vsel %vm702, %v592, 0
  %v767 = vsel %vm702, %v595, 0
  %v770 = vsel %vm702, %v598, 0
  %v773 = vsel %vm702, %v601, 0
  %v776 = vsel %vm702, %v604, 0
  %v779 = vsel %vm702, %v607, 0
  %v782 = vsel %vm702, %v610, 0
  %v785 = vsel %vm702, %v613, 0
  %v788 = vsel %vm702, %v616, 0
  %v791 = vsel %vm702, %v619, 0
  %v794 = vsel %vm702, %v622, 0
  %v797 = vsel %vm702, %v625, 0
  %v800 = vsel %vm702, %v628, 0
  %v803 = vsel %vm702, %v631, 0
  %v806 = vsel %vm702, %v634, 0
  %v809 = vsel %vm702, %v637, 0
  %811 = vmatprep.subr.bf16.mxu0 %v543
  %812 = vmatpush1.bf16.xpose.msra.mxu0 %v542
  %813 = vmatprep.subr.bf16.mxu0 %v546
  %814 = vmatpush1.bf16.xpose.msra.mxu0 %v545
  %815 = vmatprep.subr.bf16.mxu0 %v549
  %816 = vmatpush1.bf16.xpose.msra.mxu0 %v548
  %817 = vmatprep.subr.bf16.mxu0 %v552
  %818 = vmatpush1.bf16.xpose.msra.mxu0 %v551
  %819 = vmatprep.subr.bf16.mxu0 %v555
  %820 = vmatpush1.bf16.xpose.msra.mxu0 %v554
  %821 = vmatprep.subr.bf16.mxu0 %v558
  %822 = vmatpush1.bf16.xpose.msra.mxu0 %v557
  %823 = vmatprep.subr.bf16.mxu0 %v561
  %824 = vmatpush1.bf16.xpose.msra.mxu0 %v560
  %825 = vmatprep.subr.bf16.mxu0 %v564
  %826 = vmatpush1.bf16.xpose.msra.mxu0 %v563
  %827 = vmatprep.subr.bf16.mxu0 %v567
  %828 = vmatpush1.bf16.xpose.msra.mxu0 %v566
  %829 = vmatprep.subr.bf16.mxu0 %v570
  %830 = vmatpush1.bf16.xpose.msra.mxu0 %v569
  %831 = vmatprep.subr.bf16.mxu0 %v573
  %832 = vmatpush1.bf16.xpose.msra.mxu0 %v572
  %833 = vmatprep.subr.bf16.mxu0 %v576
  %834 = vmatpush1.bf16.xpose.msra.mxu0 %v575
  %835 = vmatprep.subr.bf16.mxu0 %v579
  %836 = vmatpush1.bf16.xpose.msra.mxu0 %v578
  %837 = vmatprep.subr.bf16.mxu0 %v582
  %838 = vmatpush1.bf16.xpose.msra.mxu0 %v581
  %839 = vmatprep.subr.bf16.mxu0 %v585
  %840 = vmatpush1.bf16.xpose.msra.mxu0 %v584
  %841 = vmatprep.subr.bf16.mxu0 %v588
  %842 = vmatpush1.bf16.xpose.msra.mxu0 %v587
  %843 = vmatprep.mubr.bf16.mxu0 %v203
  %844 = vmatmul.mubr.bf16.gmra.mrb[0].mxu0 %v202
  %v845 = vpop.f32.mrb[0].mxu0
  %v846 = vadd.f32 0.0, %v845
  %v847 = vpop.f32.mrb[0].mxu0
  %v848 = vadd.f32 0.0, %v847
  %v849 = vpop.f32.mrb[0].mxu0
  %v850 = vadd.f32 0.0, %v849
  %v851 = vpop.f32.mrb[0].mxu0
  %v852 = vadd.f32 0.0, %v851
  %853 = vmatprep.mubr.bf16.mxu0 %v206
  %854 = vmatmul.mubr.bf16.gmra.mrb[0].mxu0 %v205
  %v855 = vpop.f32.mrb[0].mxu0
  %v856 = vadd.f32 0.0, %v855
  %v857 = vpop.f32.mrb[0].mxu0
  %v858 = vadd.f32 0.0, %v857
  %v859 = vpop.f32.mrb[0].mxu0
  %v860 = vadd.f32 0.0, %v859
  %v861 = vpop.f32.mrb[0].mxu0
  %v862 = vadd.f32 0.0, %v861
  %863 = vmatprep.mubr.bf16.mxu0 %v209
  %864 = vmatmul.mubr.bf16.gmra.mrb[0].mxu0 %v208
  %v865 = vpop.f32.mrb[0].mxu0
  %v866 = vadd.f32 0.0, %v865
  %v867 = vpop.f32.mrb[0].mxu0
  %v868 = vadd.f32 0.0, %v867
  %v869 = vpop.f32.mrb[0].mxu0
  %v870 = vadd.f32 0.0, %v869
  %v871 = vpop.f32.mrb[0].mxu0
  %v872 = vadd.f32 0.0, %v871
  %873 = vmatprep.mubr.bf16.mxu0 %v212
  %874 = vmatmul.mubr.bf16.gmra.mrb[0].mxu0 %v211
  %v875 = vpop.f32.mrb[0].mxu0
  %v876 = vadd.f32 0.0, %v875
  %v877 = vpop.f32.mrb[0].mxu0
  %v878 = vadd.f32 0.0, %v877
  %v879 = vpop.f32.mrb[0].mxu0
  %v880 = vadd.f32 0.0, %v879
  %v881 = vpop.f32.mrb[0].mxu0
  %v882 = vadd.f32 0.0, %v881
  %883 = vdwg.mxu0
  %884 = vmatprep.subr.bf16.mxu0 0
  %885 = vmatpush1.bf16.xpose.msra.mxu0 %v716
  %886 = vmatprep.subr.bf16.mxu0 0
  %887 = vmatpush1.bf16.xpose.msra.mxu0 %v719
  %888 = vmatprep.subr.bf16.mxu0 0
  %889 = vmatpush1.bf16.xpose.msra.mxu0 %v722
  %890 = vmatprep.subr.bf16.mxu0 0
  %891 = vmatpush1.bf16.xpose.msra.mxu0 %v725
  %892 = vmatprep.subr.bf16.mxu0 0
  %893 = vmatpush1.bf16.xpose.msra.mxu0 %v728
  %894 = vmatprep.subr.bf16.mxu0 0
  %895 = vmatpush1.bf16.xpose.msra.mxu0 %v731
  %896 = vmatprep.subr.bf16.mxu0 0
  %897 = vmatpush1.bf16.xpose.msra.mxu0 %v734
  %898 = vmatprep.subr.bf16.mxu0 0
  %899 = vmatpush1.bf16.xpose.msra.mxu0 %v737
  %900 = vmatprep.subr.bf16.mxu0 0
  %901 = vmatpush1.bf16.xpose.msra.mxu0 %v740
  %902 = vmatprep.subr.bf16.mxu0 0
  %903 = vmatpush1.bf16.xpose.msra.mxu0 %v743
  %904 = vmatprep.subr.bf16.mxu0 0
  %905 = vmatpush1.bf16.xpose.msra.mxu0 %v746
  %906 = vmatprep.subr.bf16.mxu0 0
  %907 = vmatpush1.bf16.xpose.msra.mxu0 %v749
  %908 = vmatprep.subr.bf16.mxu0 0
  %909 = vmatpush1.bf16.xpose.msra.mxu0 %v752
  %910 = vmatprep.subr.bf16.mxu0 0
  %911 = vmatpush1.bf16.xpose.msra.mxu0 %v755
  %912 = vmatprep.subr.bf16.mxu0 0
  %913 = vmatpush1.bf16.xpose.msra.mxu0 %v758
  %914 = vmatprep.subr.bf16.mxu0 0
  %915 = vmatpush1.bf16.xpose.msra.mxu0 %v761
  %916 = vmatprep.mubr.bf16.mxu0 0
  %917 = vmatmul.mubr.bf16.gmra.mrb[0].mxu0 %v704
  %v918 = vpop.f32.mrb[0].mxu0
  %v919 = vadd.f32 %v846, %v918
  %v920 = vpop.f32.mrb[0].mxu0
  %v921 = vadd.f32 %v848, %v920
  %v922 = vpop.f32.mrb[0].mxu0
  %v923 = vadd.f32 %v850, %v922
  %v924 = vpop.f32.mrb[0].mxu0
  %v925 = vadd.f32 %v852, %v924
  %926 = vmatprep.mubr.bf16.mxu0 0
  %927 = vmatmul.mubr.bf16.gmra.mrb[0].mxu0 %v707
  %v928 = vpop.f32.mrb[0].mxu0
  %v929 = vadd.f32 %v856, %v928
  %v930 = vpop.f32.mrb[0].mxu0
  %v931 = vadd.f32 %v858, %v930
  %v932 = vpop.f32.mrb[0].mxu0
  %v933 = vadd.f32 %v860, %v932
  %v934 = vpop.f32.mrb[0].mxu0
  %v935 = vadd.f32 %v862, %v934
  %936 = vmatprep.mubr.bf16.mxu0 0
  %937 = vmatmul.mubr.bf16.gmra.mrb[0].mxu0 %v710
  %v938 = vpop.f32.mrb[0].mxu0
  %v939 = vadd.f32 %v866, %v938
  %v940 = vpop.f32.mrb[0].mxu0
  %v941 = vadd.f32 %v868, %v940
  %v942 = vpop.f32.mrb[0].mxu0
  %v943 = vadd.f32 %v870, %v942
  %v944 = vpop.f32.mrb[0].mxu0
  %v945 = vadd.f32 %v872, %v944
  %946 = vmatprep.mubr.bf16.mxu0 0
  %947 = vmatmul.mubr.bf16.gmra.mrb[0].mxu0 %v713
  %v948 = vpop.f32.mrb[0].mxu0
  %v949 = vadd.f32 %v876, %v948
  %v950 = vpop.f32.mrb[0].mxu0
  %v951 = vadd.f32 %v878, %v950
  %v952 = vpop.f32.mrb[0].mxu0
  %v953 = vadd.f32 %v880, %v952
  %v954 = vpop.f32.mrb[0].mxu0
  %v955 = vadd.f32 %v882, %v954
  %956 = vdwg.mxu0
  %957 = vmatprep.subr.bf16.mxu0 %v591
  %958 = vmatpush1.bf16.xpose.msra.mxu0 %v590
  %959 = vmatprep.subr.bf16.mxu0 %v594
  %960 = vmatpush1.bf16.xpose.msra.mxu0 %v593
  %961 = vmatprep.subr.bf16.mxu0 %v597
  %962 = vmatpush1.bf16.xpose.msra.mxu0 %v596
  %963 = vmatprep.subr.bf16.mxu0 %v600
  %964 = vmatpush1.bf16.xpose.msra.mxu0 %v599
  %965 = vmatprep.subr.bf16.mxu0 %v603
  %966 = vmatpush1.bf16.xpose.msra.mxu0 %v602
  %967 = vmatprep.subr.bf16.mxu0 %v606
  %968 = vmatpush1.bf16.xpose.msra.mxu0 %v605
  %969 = vmatprep.subr.bf16.mxu0 %v609
  %970 = vmatpush1.bf16.xpose.msra.mxu0 %v608
  %971 = vmatprep.subr.bf16.mxu0 %v612
  %972 = vmatpush1.bf16.xpose.msra.mxu0 %v611
  %973 = vmatprep.subr.bf16.mxu0 %v615
  %974 = vmatpush1.bf16.xpose.msra.mxu0 %v614
  %975 = vmatprep.subr.bf16.mxu0 %v618
  %976 = vmatpush1.bf16.xpose.msra.mxu0 %v617
  %977 = vmatprep.subr.bf16.mxu0 %v621
  %978 = vmatpush1.bf16.xpose.msra.mxu0 %v620
  %979 = vmatprep.subr.bf16.mxu0 %v624
  %980 = vmatpush1.bf16.xpose.msra.mxu0 %v623
  %981 = vmatprep.subr.bf16.mxu0 %v627
  %982 = vmatpush1.bf16.xpose.msra.mxu0 %v626
  %983 = vmatprep.subr.bf16.mxu0 %v630
  %984 = vmatpush1.bf16.xpose.msra.mxu0 %v629
  %985 = vmatprep.subr.bf16.mxu0 %v633
  %986 = vmatpush1.bf16.xpose.msra.mxu0 %v632
  %987 = vmatprep.subr.bf16.mxu0 %v636
  %988 = vmatpush1.bf16.xpose.msra.mxu0 %v635
  %989 = vmatprep.mubr.bf16.mxu0 %v203
  %990 = vmatmul.mubr.bf16.gmra.mrb[0].mxu0 %v202
  %v991 = vpop.f32.mrb[0].mxu0
  %v992 = vadd.f32 0.0, %v991
  %v993 = vpop.f32.mrb[0].mxu0
  %v994 = vadd.f32 0.0, %v993
  %v995 = vpop.f32.mrb[0].mxu0
  %v996 = vadd.f32 0.0, %v995
  %v997 = vpop.f32.mrb[0].mxu0
  %v998 = vadd.f32 0.0, %v997
  %999 = vmatprep.mubr.bf16.mxu0 %v206
  %1000 = vmatmul.mubr.bf16.gmra.mrb[0].mxu0 %v205
  %v1001 = vpop.f32.mrb[0].mxu0
  %v1002 = vadd.f32 0.0, %v1001
  %v1003 = vpop.f32.mrb[0].mxu0
  %v1004 = vadd.f32 0.0, %v1003
  %v1005 = vpop.f32.mrb[0].mxu0
  %v1006 = vadd.f32 0.0, %v1005
  %v1007 = vpop.f32.mrb[0].mxu0
  %v1008 = vadd.f32 0.0, %v1007
  %1009 = vmatprep.mubr.bf16.mxu0 %v209
  %1010 = vmatmul.mubr.bf16.gmra.mrb[0].mxu0 %v208
  %v1011 = vpop.f32.mrb[0].mxu0
  %v1012 = vadd.f32 0.0, %v1011
  %v1013 = vpop.f32.mrb[0].mxu0
  %v1014 = vadd.f32 0.0, %v1013
  %v1015 = vpop.f32.mrb[0].mxu0
  %v1016 = vadd.f32 0.0, %v1015
  %v1017 = vpop.f32.mrb[0].mxu0
  %v1018 = vadd.f32 0.0, %v1017
  %1019 = vmatprep.mubr.bf16.mxu0 %v212
  %1020 = vmatmul.mubr.bf16.gmra.mrb[0].mxu0 %v211
  %v1021 = vpop.f32.mrb[0].mxu0
  %v1022 = vadd.f32 0.0, %v1021
  %v1023 = vpop.f32.mrb[0].mxu0
  %v1024 = vadd.f32 0.0, %v1023
  %v1025 = vpop.f32.mrb[0].mxu0
  %v1026 = vadd.f32 0.0, %v1025
  %v1027 = vpop.f32.mrb[0].mxu0
  %v1028 = vadd.f32 0.0, %v1027
  %1029 = vdwg.mxu0
  %1030 = vmatprep.subr.bf16.mxu0 0
  %1031 = vmatpush1.bf16.xpose.msra.mxu0 %v764
  %1032 = vmatprep.subr.bf16.mxu0 0
  %1033 = vmatpush1.bf16.xpose.msra.mxu0 %v767
  %1034 = vmatprep.subr.bf16.mxu0 0
  %1035 = vmatpush1.bf16.xpose.msra.mxu0 %v770
  %1036 = vmatprep.subr.bf16.mxu0 0
  %1037 = vmatpush1.bf16.xpose.msra.mxu0 %v773
  %1038 = vmatprep.subr.bf16.mxu0 0
  %1039 = vmatpush1.bf16.xpose.msra.mxu0 %v776
  %1040 = vmatprep.subr.bf16.mxu0 0
  %1041 = vmatpush1.bf16.xpose.msra.mxu0 %v779
  %1042 = vmatprep.subr.bf16.mxu0 0
  %1043 = vmatpush1.bf16.xpose.msra.mxu0 %v782
  %1044 = vmatprep.subr.bf16.mxu0 0
  %1045 = vmatpush1.bf16.xpose.msra.mxu0 %v785
  %1046 = vmatprep.subr.bf16.mxu0 0
  %1047 = vmatpush1.bf16.xpose.msra.mxu0 %v788
  %1048 = vmatprep.subr.bf16.mxu0 0
  %1049 = vmatpush1.bf16.xpose.msra.mxu0 %v791
  %1050 = vmatprep.subr.bf16.mxu0 0
  %1051 = vmatpush1.bf16.xpose.msra.mxu0 %v794
  %1052 = vmatprep.subr.bf16.mxu0 0
  %1053 = vmatpush1.bf16.xpose.msra.mxu0 %v797
  %1054 = vmatprep.subr.bf16.mxu0 0
  %1055 = vmatpush1.bf16.xpose.msra.mxu0 %v800
  %1056 = vmatprep.subr.bf16.mxu0 0
  %1057 = vmatpush1.bf16.xpose.msra.mxu0 %v803
  %1058 = vmatprep.subr.bf16.mxu0 0
  %1059 = vmatpush1.bf16.xpose.msra.mxu0 %v806
  %1060 = vmatprep.subr.bf16.mxu0 0
  %1061 = vmatpush1.bf16.xpose.msra.mxu0 %v809
  %1062 = vmatprep.mubr.bf16.mxu0 0
  %1063 = vmatmul.mubr.bf16.gmra.mrb[0].mxu0 %v704
  %v1064 = vpop.f32.mrb[0].mxu0
  %v1065 = vadd.f32 %v992, %v1064
  %v1066 = vpop.f32.mrb[0].mxu0
  %v1067 = vadd.f32 %v994, %v1066
  %v1068 = vpop.f32.mrb[0].mxu0
  %v1069 = vadd.f32 %v996, %v1068
  %v1070 = vpop.f32.mrb[0].mxu0
  %v1071 = vadd.f32 %v998, %v1070
  %1072 = vmatprep.mubr.bf16.mxu0 0
  %1073 = vmatmul.mubr.bf16.gmra.mrb[0].mxu0 %v707
  %v1074 = vpop.f32.mrb[0].mxu0
  %v1075 = vadd.f32 %v1002, %v1074
  %v1076 = vpop.f32.mrb[0].mxu0
  %v1077 = vadd.f32 %v1004, %v1076
  %v1078 = vpop.f32.mrb[0].mxu0
  %v1079 = vadd.f32 %v1006, %v1078
  %v1080 = vpop.f32.mrb[0].mxu0
  %v1081 = vadd.f32 %v1008, %v1080
  %1082 = vmatprep.mubr.bf16.mxu0 0
  %1083 = vmatmul.mubr.bf16.gmra.mrb[0].mxu0 %v710
  %v1084 = vpop.f32.mrb[0].mxu0
  %v1085 = vadd.f32 %v1012, %v1084
  %v1086 = vpop.f32.mrb[0].mxu0
  %v1087 = vadd.f32 %v1014, %v1086
  %v1088 = vpop.f32.mrb[0].mxu0
  %v1089 = vadd.f32 %v1016, %v1088
  %v1090 = vpop.f32.mrb[0].mxu0
  %v1091 = vadd.f32 %v1018, %v1090
  %1092 = vmatprep.mubr.bf16.mxu0 0
  %1093 = vmatmul.mubr.bf16.gmra.mrb[0].mxu0 %v713
  %v1094 = vpop.f32.mrb[0].mxu0
  %v1095 = vadd.f32 %v1022, %v1094
  %v1096 = vpop.f32.mrb[0].mxu0
  %v1097 = vadd.f32 %v1024, %v1096
  %v1098 = vpop.f32.mrb[0].mxu0
  %v1099 = vadd.f32 %v1026, %v1098
  %v1100 = vpop.f32.mrb[0].mxu0
  %v1101 = vadd.f32 %v1028, %v1100
  %1102 = vdwg.mxu0
  %1103 = vadd.xlane.f32.xlu0 %v919
  %v1104 = vpop.xlane.xlu0 %1103
  %1105 = vadd.xlane.f32.xlu0 %v923
  %v1106 = vpop.xlane.xlu0 %1105
  %1107 = vadd.xlane.f32.xlu0 %v929
  %v1108 = vpop.xlane.xlu0 %1107
  %1109 = vadd.xlane.f32.xlu0 %v933
  %v1110 = vpop.xlane.xlu0 %1109
  %1111 = vadd.xlane.f32.xlu0 %v939
  %v1112 = vpop.xlane.xlu0 %1111
  %1113 = vadd.xlane.f32.xlu0 %v943
  %v1114 = vpop.xlane.xlu0 %1113
  %1115 = vadd.xlane.f32.xlu0 %v949
  %v1116 = vpop.xlane.xlu0 %1115
  %1117 = vadd.xlane.f32.xlu0 %v953
  %v1118 = vpop.xlane.xlu0 %1117
  %v1119 = vadd.f32 %v1104, 0.0
  %v1120 = vadd.f32 %v1106, 0.0
  %v1121 = vadd.f32 %v1108, 0.0
  %v1122 = vadd.f32 %v1110, 0.0
  %v1123 = vadd.f32 %v1112, 0.0
  %v1124 = vadd.f32 %v1114, 0.0
  %v1125 = vadd.f32 %v1116, 0.0
  %v1126 = vadd.f32 %v1118, 0.0
  %v1127 = vmul.f32 %v919, %v919
  %v1128 = vmul.f32 %v923, %v923
  %v1129 = vmul.f32 %v929, %v929
  %v1130 = vmul.f32 %v933, %v933
  %v1131 = vmul.f32 %v939, %v939
  %v1132 = vmul.f32 %v943, %v943
  %v1133 = vmul.f32 %v949, %v949
  %v1134 = vmul.f32 %v953, %v953
  %1135 = vadd.xlane.f32.xlu0 %v1127
  %v1136 = vpop.xlane.xlu0 %1135
  %1137 = vadd.xlane.f32.xlu0 %v1128
  %v1138 = vpop.xlane.xlu0 %1137
  %1139 = vadd.xlane.f32.xlu0 %v1129
  %v1140 = vpop.xlane.xlu0 %1139
  %1141 = vadd.xlane.f32.xlu0 %v1130
  %v1142 = vpop.xlane.xlu0 %1141
  %1143 = vadd.xlane.f32.xlu0 %v1131
  %v1144 = vpop.xlane.xlu0 %1143
  %1145 = vadd.xlane.f32.xlu0 %v1132
  %v1146 = vpop.xlane.xlu0 %1145
  %1147 = vadd.xlane.f32.xlu0 %v1133
  %v1148 = vpop.xlane.xlu0 %1147
  %1149 = vadd.xlane.f32.xlu0 %v1134
  %v1150 = vpop.xlane.xlu0 %1149
  %v1151 = vadd.f32 %v1136, 0.0
  %v1152 = vadd.f32 %v1138, 0.0
  %v1153 = vadd.f32 %v1140, 0.0
  %v1154 = vadd.f32 %v1142, 0.0
  %v1155 = vadd.f32 %v1144, 0.0
  %v1156 = vadd.f32 %v1146, 0.0
  %v1157 = vadd.f32 %v1148, 0.0
  %v1158 = vadd.f32 %v1150, 0.0
  %1159 = vadd.xlane.f32.xlu0 %v921
  %v1160 = vpop.xlane.xlu0 %1159
  %1161 = vadd.xlane.f32.xlu0 %v925
  %v1162 = vpop.xlane.xlu0 %1161
  %1163 = vadd.xlane.f32.xlu0 %v931
  %v1164 = vpop.xlane.xlu0 %1163
  %1165 = vadd.xlane.f32.xlu0 %v935
  %v1166 = vpop.xlane.xlu0 %1165
  %1167 = vadd.xlane.f32.xlu0 %v941
  %v1168 = vpop.xlane.xlu0 %1167
  %1169 = vadd.xlane.f32.xlu0 %v945
  %v1170 = vpop.xlane.xlu0 %1169
  %1171 = vadd.xlane.f32.xlu0 %v951
  %v1172 = vpop.xlane.xlu0 %1171
  %1173 = vadd.xlane.f32.xlu0 %v955
  %v1174 = vpop.xlane.xlu0 %1173
  %v1175 = vadd.f32 %v1119, %v1160
  %v1176 = vadd.f32 %v1120, %v1162
  %v1177 = vadd.f32 %v1121, %v1164
  %v1178 = vadd.f32 %v1122, %v1166
  %v1179 = vadd.f32 %v1123, %v1168
  %v1180 = vadd.f32 %v1124, %v1170
  %v1181 = vadd.f32 %v1125, %v1172
  %v1182 = vadd.f32 %v1126, %v1174
  %v1183 = vmul.f32 %v921, %v921
  %v1184 = vmul.f32 %v925, %v925
  %v1185 = vmul.f32 %v931, %v931
  %v1186 = vmul.f32 %v935, %v935
  %v1187 = vmul.f32 %v941, %v941
  %v1188 = vmul.f32 %v945, %v945
  %v1189 = vmul.f32 %v951, %v951
  %v1190 = vmul.f32 %v955, %v955
  %1191 = vadd.xlane.f32.xlu0 %v1183
  %v1192 = vpop.xlane.xlu0 %1191
  %1193 = vadd.xlane.f32.xlu0 %v1184
  %v1194 = vpop.xlane.xlu0 %1193
  %1195 = vadd.xlane.f32.xlu0 %v1185
  %v1196 = vpop.xlane.xlu0 %1195
  %1197 = vadd.xlane.f32.xlu0 %v1186
  %v1198 = vpop.xlane.xlu0 %1197
  %1199 = vadd.xlane.f32.xlu0 %v1187
  %v1200 = vpop.xlane.xlu0 %1199
  %1201 = vadd.xlane.f32.xlu0 %v1188
  %v1202 = vpop.xlane.xlu0 %1201
  %1203 = vadd.xlane.f32.xlu0 %v1189
  %v1204 = vpop.xlane.xlu0 %1203
  %1205 = vadd.xlane.f32.xlu0 %v1190
  %v1206 = vpop.xlane.xlu0 %1205
  %v1207 = vadd.f32 %v1151, %v1192
  %v1208 = vadd.f32 %v1152, %v1194
  %v1209 = vadd.f32 %v1153, %v1196
  %v1210 = vadd.f32 %v1154, %v1198
  %v1211 = vadd.f32 %v1155, %v1200
  %v1212 = vadd.f32 %v1156, %v1202
  %v1213 = vadd.f32 %v1157, %v1204
  %v1214 = vadd.f32 %v1158, %v1206
  %1215 = vadd.xlane.f32.xlu0 %v1065
  %v1216 = vpop.xlane.xlu0 %1215
  %1217 = vadd.xlane.f32.xlu0 %v1069
  %v1218 = vpop.xlane.xlu0 %1217
  %1219 = vadd.xlane.f32.xlu0 %v1075
  %v1220 = vpop.xlane.xlu0 %1219
  %1221 = vadd.xlane.f32.xlu0 %v1079
  %v1222 = vpop.xlane.xlu0 %1221
  %1223 = vadd.xlane.f32.xlu0 %v1085
  %v1224 = vpop.xlane.xlu0 %1223
  %1225 = vadd.xlane.f32.xlu0 %v1089
  %v1226 = vpop.xlane.xlu0 %1225
  %1227 = vadd.xlane.f32.xlu0 %v1095
  %v1228 = vpop.xlane.xlu0 %1227
  %1229 = vadd.xlane.f32.xlu0 %v1099
  %v1230 = vpop.xlane.xlu0 %1229
  %v1231 = vadd.f32 %v1175, %v1216
  %v1232 = vadd.f32 %v1176, %v1218
  %v1233 = vadd.f32 %v1177, %v1220
  %v1234 = vadd.f32 %v1178, %v1222
  %v1235 = vadd.f32 %v1179, %v1224
  %v1236 = vadd.f32 %v1180, %v1226
  %v1237 = vadd.f32 %v1181, %v1228
  %v1238 = vadd.f32 %v1182, %v1230
  %v1239 = vmul.f32 %v1065, %v1065
  %v1240 = vmul.f32 %v1069, %v1069
  %v1241 = vmul.f32 %v1075, %v1075
  %v1242 = vmul.f32 %v1079, %v1079
  %v1243 = vmul.f32 %v1085, %v1085
  %v1244 = vmul.f32 %v1089, %v1089
  %v1245 = vmul.f32 %v1095, %v1095
  %v1246 = vmul.f32 %v1099, %v1099
  %1247 = vadd.xlane.f32.xlu0 %v1239
  %v1248 = vpop.xlane.xlu0 %1247
  %1249 = vadd.xlane.f32.xlu0 %v1240
  %v1250 = vpop.xlane.xlu0 %1249
  %1251 = vadd.xlane.f32.xlu0 %v1241
  %v1252 = vpop.xlane.xlu0 %1251
  %1253 = vadd.xlane.f32.xlu0 %v1242
  %v1254 = vpop.xlane.xlu0 %1253
  %1255 = vadd.xlane.f32.xlu0 %v1243
  %v1256 = vpop.xlane.xlu0 %1255
  %1257 = vadd.xlane.f32.xlu0 %v1244
  %v1258 = vpop.xlane.xlu0 %1257
  %1259 = vadd.xlane.f32.xlu0 %v1245
  %v1260 = vpop.xlane.xlu0 %1259
  %1261 = vadd.xlane.f32.xlu0 %v1246
  %v1262 = vpop.xlane.xlu0 %1261
  %v1263 = vadd.f32 %v1207, %v1248
  %v1264 = vadd.f32 %v1208, %v1250
  %v1265 = vadd.f32 %v1209, %v1252
  %v1266 = vadd.f32 %v1210, %v1254
  %v1267 = vadd.f32 %v1211, %v1256
  %v1268 = vadd.f32 %v1212, %v1258
  %v1269 = vadd.f32 %v1213, %v1260
  %v1270 = vadd.f32 %v1214, %v1262
  %1271 = vadd.xlane.f32.xlu0 %v1067
  %v1272 = vpop.xlane.xlu0 %1271
  %1273 = vadd.xlane.f32.xlu0 %v1071
  %v1274 = vpop.xlane.xlu0 %1273
  %1275 = vadd.xlane.f32.xlu0 %v1077
  %v1276 = vpop.xlane.xlu0 %1275
  %1277 = vadd.xlane.f32.xlu0 %v1081
  %v1278 = vpop.xlane.xlu0 %1277
  %1279 = vadd.xlane.f32.xlu0 %v1087
  %v1280 = vpop.xlane.xlu0 %1279
  %1281 = vadd.xlane.f32.xlu0 %v1091
  %v1282 = vpop.xlane.xlu0 %1281
  %1283 = vadd.xlane.f32.xlu0 %v1097
  %v1284 = vpop.xlane.xlu0 %1283
  %1285 = vadd.xlane.f32.xlu0 %v1101
  %v1286 = vpop.xlane.xlu0 %1285
  %v1287 = vadd.f32 %v1231, %v1272
  %v1288 = vadd.f32 %v1232, %v1274
  %v1289 = vadd.f32 %v1233, %v1276
  %v1290 = vadd.f32 %v1234, %v1278
  %v1291 = vadd.f32 %v1235, %v1280
  %v1292 = vadd.f32 %v1236, %v1282
  %v1293 = vadd.f32 %v1237, %v1284
  %v1294 = vadd.f32 %v1238, %v1286
  %v1295 = vmul.f32 %v1067, %v1067
  %v1296 = vmul.f32 %v1071, %v1071
  %v1297 = vmul.f32 %v1077, %v1077
  %v1298 = vmul.f32 %v1081, %v1081
  %v1299 = vmul.f32 %v1087, %v1087
  %v1300 = vmul.f32 %v1091, %v1091
  %v1301 = vmul.f32 %v1097, %v1097
  %v1302 = vmul.f32 %v1101, %v1101
  %1303 = vadd.xlane.f32.xlu0 %v1295
  %v1304 = vpop.xlane.xlu0 %1303
  %1305 = vadd.xlane.f32.xlu0 %v1296
  %v1306 = vpop.xlane.xlu0 %1305
  %1307 = vadd.xlane.f32.xlu0 %v1297
  %v1308 = vpop.xlane.xlu0 %1307
  %1309 = vadd.xlane.f32.xlu0 %v1298
  %v1310 = vpop.xlane.xlu0 %1309
  %1311 = vadd.xlane.f32.xlu0 %v1299
  %v1312 = vpop.xlane.xlu0 %1311
  %1313 = vadd.xlane.f32.xlu0 %v1300
  %v1314 = vpop.xlane.xlu0 %1313
  %1315 = vadd.xlane.f32.xlu0 %v1301
  %v1316 = vpop.xlane.xlu0 %1315
  %1317 = vadd.xlane.f32.xlu0 %v1302
  %v1318 = vpop.xlane.xlu0 %1317
  %v1319 = vadd.f32 %v1263, %v1304
  %v1320 = vadd.f32 %v1264, %v1306
  %v1321 = vadd.f32 %v1265, %v1308
  %v1322 = vadd.f32 %v1266, %v1310
  %v1323 = vadd.f32 %v1267, %v1312
  %v1324 = vadd.f32 %v1268, %v1314
  %v1325 = vadd.f32 %v1269, %v1316
  %v1326 = vadd.f32 %v1270, %v1318
  %v1327 = vmul.f32 %v1287, 0.001953125
  %v1328 = vmul.f32 %v1288, 0.001953125
  %v1329 = vmul.f32 %v1289, 0.001953125
  %v1330 = vmul.f32 %v1290, 0.001953125
  %v1331 = vmul.f32 %v1291, 0.001953125
  %v1332 = vmul.f32 %v1292, 0.001953125
  %v1333 = vmul.f32 %v1293, 0.001953125
  %v1334 = vmul.f32 %v1294, 0.001953125
  %v1335 = vmul.f32 %v1319, 0.001953125
  %v1336 = vmul.f32 %v1320, 0.001953125
  %v1337 = vmul.f32 %v1321, 0.001953125
  %v1338 = vmul.f32 %v1322, 0.001953125
  %v1339 = vmul.f32 %v1323, 0.001953125
  %v1340 = vmul.f32 %v1324, 0.001953125
  %v1341 = vmul.f32 %v1325, 0.001953125
  %v1342 = vmul.f32 %v1326, 0.001953125
  %v1343 = vmul.f32 %v1327, %v1327
  %v1344 = vmul.f32 %v1328, %v1328
  %v1345 = vmul.f32 %v1329, %v1329
  %v1346 = vmul.f32 %v1330, %v1330
  %v1347 = vmul.f32 %v1331, %v1331
  %v1348 = vmul.f32 %v1332, %v1332
  %v1349 = vmul.f32 %v1333, %v1333
  %v1350 = vmul.f32 %v1334, %v1334
  %v1351 = vsub.f32 %v1335, %v1343
  %v1352 = vsub.f32 %v1336, %v1344
  %v1353 = vsub.f32 %v1337, %v1345
  %v1354 = vsub.f32 %v1338, %v1346
  %v1355 = vsub.f32 %v1339, %v1347
  %v1356 = vsub.f32 %v1340, %v1348
  %v1357 = vsub.f32 %v1341, %v1349
  %v1358 = vsub.f32 %v1342, %v1350
  %v1359 = vmax.f32 %v1351, 0.0
  %v1360 = vmax.f32 %v1352, 0.0
  %v1361 = vmax.f32 %v1353, 0.0
  %v1362 = vmax.f32 %v1354, 0.0
  %v1363 = vmax.f32 %v1355, 0.0
  %v1364 = vmax.f32 %v1356, 0.0
  %v1365 = vmax.f32 %v1357, 0.0
  %v1366 = vmax.f32 %v1358, 0.0
  %v1367 = vld [vmem:[%s2] sm:$0xff]
  %v1368 = vld [vmem:[%s2 + $0x8] sm:$0xff]
  %v1369 = vld [vmem:[%s2 + $0x10] sm:$0xff]
  %v1370 = vld [vmem:[%s2 + $0x18] sm:$0xff]
  %v1371 = vld [vmem:[%s2 + $0x20] sm:$0xff]
  %v1372 = vld [vmem:[%s2 + $0x28] sm:$0xff]
  %v1373 = vld [vmem:[%s2 + $0x30] sm:$0xff]
  %v1374 = vld [vmem:[%s2 + $0x38] sm:$0xff]
  %v1375 = vadd.f32 %v1359, 1e-05
  %v1376 = vadd.f32 %v1360, 1e-05
  %v1377 = vadd.f32 %v1361, 1e-05
  %v1378 = vadd.f32 %v1362, 1e-05
  %v1379 = vadd.f32 %v1363, 1e-05
  %v1380 = vadd.f32 %v1364, 1e-05
  %v1381 = vadd.f32 %v1365, 1e-05
  %v1382 = vadd.f32 %v1366, 1e-05
  %v1383 = vrsqrt.pop %v1375
  %v1384 = vrsqrt.pop %v1376
  %v1385 = vrsqrt.pop %v1377
  %v1386 = vrsqrt.pop %v1378
  %v1387 = vrsqrt.pop %v1379
  %v1388 = vrsqrt.pop %v1380
  %v1389 = vrsqrt.pop %v1381
  %v1390 = vrsqrt.pop %v1382
  %v1391 = vmul.f32 %v1367, %v1383
  %v1392 = vmul.f32 %v1368, %v1384
  %v1393 = vmul.f32 %v1369, %v1385
  %v1394 = vmul.f32 %v1370, %v1386
  %v1395 = vmul.f32 %v1371, %v1387
  %v1396 = vmul.f32 %v1372, %v1388
  %v1397 = vmul.f32 %v1373, %v1389
  %v1398 = vmul.f32 %v1374, %v1390
  %v1399 = vld [vmem:[%s3] sm:$0xff]
  %v1400 = vld [vmem:[%s3 + $0x8] sm:$0xff]
  %v1401 = vld [vmem:[%s3 + $0x10] sm:$0xff]
  %v1402 = vld [vmem:[%s3 + $0x18] sm:$0xff]
  %v1403 = vld [vmem:[%s3 + $0x20] sm:$0xff]
  %v1404 = vld [vmem:[%s3 + $0x28] sm:$0xff]
  %v1405 = vld [vmem:[%s3 + $0x30] sm:$0xff]
  %v1406 = vld [vmem:[%s3 + $0x38] sm:$0xff]
  %v1407 = vmul.f32 %v1327, %v1391
  %v1408 = vmul.f32 %v1328, %v1392
  %v1409 = vmul.f32 %v1329, %v1393
  %v1410 = vmul.f32 %v1330, %v1394
  %v1411 = vmul.f32 %v1331, %v1395
  %v1412 = vmul.f32 %v1332, %v1396
  %v1413 = vmul.f32 %v1333, %v1397
  %v1414 = vmul.f32 %v1334, %v1398
  %v1415 = vsub.f32 %v1399, %v1407
  %v1416 = vsub.f32 %v1400, %v1408
  %v1417 = vsub.f32 %v1401, %v1409
  %v1418 = vsub.f32 %v1402, %v1410
  %v1419 = vsub.f32 %v1403, %v1411
  %v1420 = vsub.f32 %v1404, %v1412
  %v1421 = vsub.f32 %v1405, %v1413
  %v1422 = vsub.f32 %v1406, %v1414
  %1424 = vset.pattern.permute.xlu0 0
  %1425 = vperm.xlu0 %1424, %v1391
  %v1426 = vpop.permute.xlu0 %1425
  %1429 = vset.pattern.permute.xlu0 0
  %1430 = vperm.xlu0 %1429, %v1392
  %v1431 = vpop.permute.xlu0 %1430
  %1434 = vset.pattern.permute.xlu0 0
  %1435 = vperm.xlu0 %1434, %v1393
  %v1436 = vpop.permute.xlu0 %1435
  %1439 = vset.pattern.permute.xlu0 0
  %1440 = vperm.xlu0 %1439, %v1394
  %v1441 = vpop.permute.xlu0 %1440
  %1444 = vset.pattern.permute.xlu0 0
  %1445 = vperm.xlu0 %1444, %v1395
  %v1446 = vpop.permute.xlu0 %1445
  %1449 = vset.pattern.permute.xlu0 0
  %1450 = vperm.xlu0 %1449, %v1396
  %v1451 = vpop.permute.xlu0 %1450
  %1454 = vset.pattern.permute.xlu0 0
  %1455 = vperm.xlu0 %1454, %v1397
  %v1456 = vpop.permute.xlu0 %1455
  %1459 = vset.pattern.permute.xlu0 0
  %1460 = vperm.xlu0 %1459, %v1398
  %v1461 = vpop.permute.xlu0 %1460
  %v1463 = vmul.f32 %v919, %v1426
  %v1464 = vmul.f32 %v921, %v1426
  %v1465 = vmul.f32 %v1065, %v1426
  %v1466 = vmul.f32 %v1067, %v1426
  %v1467 = vmul.f32 %v923, %v1431
  %v1468 = vmul.f32 %v925, %v1431
  %v1469 = vmul.f32 %v1069, %v1431
  %v1470 = vmul.f32 %v1071, %v1431
  %v1471 = vmul.f32 %v929, %v1436
  %v1472 = vmul.f32 %v931, %v1436
  %v1473 = vmul.f32 %v1075, %v1436
  %v1474 = vmul.f32 %v1077, %v1436
  %v1475 = vmul.f32 %v933, %v1441
  %v1476 = vmul.f32 %v935, %v1441
  %v1477 = vmul.f32 %v1079, %v1441
  %v1478 = vmul.f32 %v1081, %v1441
  %v1479 = vmul.f32 %v939, %v1446
  %v1480 = vmul.f32 %v941, %v1446
  %v1481 = vmul.f32 %v1085, %v1446
  %v1482 = vmul.f32 %v1087, %v1446
  %v1483 = vmul.f32 %v943, %v1451
  %v1484 = vmul.f32 %v945, %v1451
  %v1485 = vmul.f32 %v1089, %v1451
  %v1486 = vmul.f32 %v1091, %v1451
  %v1487 = vmul.f32 %v949, %v1456
  %v1488 = vmul.f32 %v951, %v1456
  %v1489 = vmul.f32 %v1095, %v1456
  %v1490 = vmul.f32 %v1097, %v1456
  %v1491 = vmul.f32 %v953, %v1461
  %v1492 = vmul.f32 %v955, %v1461
  %v1493 = vmul.f32 %v1099, %v1461
  %v1494 = vmul.f32 %v1101, %v1461
  %1496 = vset.pattern.permute.xlu0 0
  %1497 = vperm.xlu0 %1496, %v1415
  %v1498 = vpop.permute.xlu0 %1497
  %1501 = vset.pattern.permute.xlu0 0
  %1502 = vperm.xlu0 %1501, %v1416
  %v1503 = vpop.permute.xlu0 %1502
  %1506 = vset.pattern.permute.xlu0 0
  %1507 = vperm.xlu0 %1506, %v1417
  %v1508 = vpop.permute.xlu0 %1507
  %1511 = vset.pattern.permute.xlu0 0
  %1512 = vperm.xlu0 %1511, %v1418
  %v1513 = vpop.permute.xlu0 %1512
  %1516 = vset.pattern.permute.xlu0 0
  %1517 = vperm.xlu0 %1516, %v1419
  %v1518 = vpop.permute.xlu0 %1517
  %1521 = vset.pattern.permute.xlu0 0
  %1522 = vperm.xlu0 %1521, %v1420
  %v1523 = vpop.permute.xlu0 %1522
  %1526 = vset.pattern.permute.xlu0 0
  %1527 = vperm.xlu0 %1526, %v1421
  %v1528 = vpop.permute.xlu0 %1527
  %1531 = vset.pattern.permute.xlu0 0
  %1532 = vperm.xlu0 %1531, %v1422
  %v1533 = vpop.permute.xlu0 %1532
  %v1535 = vadd.f32 %v1463, %v1498
  %v1536 = vadd.f32 %v1464, %v1498
  %v1537 = vadd.f32 %v1465, %v1498
  %v1538 = vadd.f32 %v1466, %v1498
  %v1539 = vadd.f32 %v1467, %v1503
  %v1540 = vadd.f32 %v1468, %v1503
  %v1541 = vadd.f32 %v1469, %v1503
  %v1542 = vadd.f32 %v1470, %v1503
  %v1543 = vadd.f32 %v1471, %v1508
  %v1544 = vadd.f32 %v1472, %v1508
  %v1545 = vadd.f32 %v1473, %v1508
  %v1546 = vadd.f32 %v1474, %v1508
  %v1547 = vadd.f32 %v1475, %v1513
  %v1548 = vadd.f32 %v1476, %v1513
  %v1549 = vadd.f32 %v1477, %v1513
  %v1550 = vadd.f32 %v1478, %v1513
  %v1551 = vadd.f32 %v1479, %v1518
  %v1552 = vadd.f32 %v1480, %v1518
  %v1553 = vadd.f32 %v1481, %v1518
  %v1554 = vadd.f32 %v1482, %v1518
  %v1555 = vadd.f32 %v1483, %v1523
  %v1556 = vadd.f32 %v1484, %v1523
  %v1557 = vadd.f32 %v1485, %v1523
  %v1558 = vadd.f32 %v1486, %v1523
  %v1559 = vadd.f32 %v1487, %v1528
  %v1560 = vadd.f32 %v1488, %v1528
  %v1561 = vadd.f32 %v1489, %v1528
  %v1562 = vadd.f32 %v1490, %v1528
  %v1563 = vadd.f32 %v1491, %v1533
  %v1564 = vadd.f32 %v1492, %v1533
  %v1565 = vadd.f32 %v1493, %v1533
  %v1566 = vadd.f32 %v1494, %v1533
  %v1567 = vmax.f32 %v1535, 0.0
  %v1568 = vmax.f32 %v1536, 0.0
  %v1569 = vmax.f32 %v1537, 0.0
  %v1570 = vmax.f32 %v1538, 0.0
  %v1571 = vmax.f32 %v1539, 0.0
  %v1572 = vmax.f32 %v1540, 0.0
  %v1573 = vmax.f32 %v1541, 0.0
  %v1574 = vmax.f32 %v1542, 0.0
  %v1575 = vmax.f32 %v1543, 0.0
  %v1576 = vmax.f32 %v1544, 0.0
  %v1577 = vmax.f32 %v1545, 0.0
  %v1578 = vmax.f32 %v1546, 0.0
  %v1579 = vmax.f32 %v1547, 0.0
  %v1580 = vmax.f32 %v1548, 0.0
  %v1581 = vmax.f32 %v1549, 0.0
  %v1582 = vmax.f32 %v1550, 0.0
  %v1583 = vmax.f32 %v1551, 0.0
  %v1584 = vmax.f32 %v1552, 0.0
  %v1585 = vmax.f32 %v1553, 0.0
  %v1586 = vmax.f32 %v1554, 0.0
  %v1587 = vmax.f32 %v1555, 0.0
  %v1588 = vmax.f32 %v1556, 0.0
  %v1589 = vmax.f32 %v1557, 0.0
  %v1590 = vmax.f32 %v1558, 0.0
  %v1591 = vmax.f32 %v1559, 0.0
  %v1592 = vmax.f32 %v1560, 0.0
  %v1593 = vmax.f32 %v1561, 0.0
  %v1594 = vmax.f32 %v1562, 0.0
  %v1595 = vmax.f32 %v1563, 0.0
  %v1596 = vmax.f32 %v1564, 0.0
  %v1597 = vmax.f32 %v1565, 0.0
  %v1598 = vmax.f32 %v1566, 0.0
  %1599 = vst [vmem:[%s4] sm:$0xff] %v1567
  %1600 = vst [vmem:[%s4 + $0x8] sm:$0xff] %v1568
  %1601 = vst [vmem:[%s4 + $0x10] sm:$0xff] %v1569
  %1602 = vst [vmem:[%s4 + $0x18] sm:$0xff] %v1570
  %1603 = vst [vmem:[%s4 + $0x20] sm:$0xff] %v1571
  %1604 = vst [vmem:[%s4 + $0x28] sm:$0xff] %v1572
  %1605 = vst [vmem:[%s4 + $0x30] sm:$0xff] %v1573
  %1606 = vst [vmem:[%s4 + $0x38] sm:$0xff] %v1574
  %1607 = vst [vmem:[%s4 + $0x40] sm:$0xff] %v1575
  %1608 = vst [vmem:[%s4 + $0x48] sm:$0xff] %v1576
  %1609 = vst [vmem:[%s4 + $0x50] sm:$0xff] %v1577
  %1610 = vst [vmem:[%s4 + $0x58] sm:$0xff] %v1578
  %1611 = vst [vmem:[%s4 + $0x60] sm:$0xff] %v1579
  %1612 = vst [vmem:[%s4 + $0x68] sm:$0xff] %v1580
  %1613 = vst [vmem:[%s4 + $0x70] sm:$0xff] %v1581
  %1614 = vst [vmem:[%s4 + $0x78] sm:$0xff] %v1582
  %1615 = vst [vmem:[%s4 + $0x80] sm:$0xff] %v1583
  %1616 = vst [vmem:[%s4 + $0x88] sm:$0xff] %v1584
  %1617 = vst [vmem:[%s4 + $0x90] sm:$0xff] %v1585
  %1618 = vst [vmem:[%s4 + $0x98] sm:$0xff] %v1586
  %1619 = vst [vmem:[%s4 + $0xa0] sm:$0xff] %v1587
  %1620 = vst [vmem:[%s4 + $0xa8] sm:$0xff] %v1588
  %1621 = vst [vmem:[%s4 + $0xb0] sm:$0xff] %v1589
  %1622 = vst [vmem:[%s4 + $0xb8] sm:$0xff] %v1590
  %1623 = vst [vmem:[%s4 + $0xc0] sm:$0xff] %v1591
  %1624 = vst [vmem:[%s4 + $0xc8] sm:$0xff] %v1592
  %1625 = vst [vmem:[%s4 + $0xd0] sm:$0xff] %v1593
  %1626 = vst [vmem:[%s4 + $0xd8] sm:$0xff] %v1594
  %1627 = vst [vmem:[%s4 + $0xe0] sm:$0xff] %v1595
  %1628 = vst [vmem:[%s4 + $0xe8] sm:$0xff] %v1596
  %1629 = vst [vmem:[%s4 + $0xf0] sm:$0xff] %v1597
  %1630 = vst [vmem:[%s4 + $0xf8] sm:$0xff] %v1598
  // Predicated region
  $region18: #{basic_conv2d.1} parent=0 // pred_check
    _
  $region19: #{basic_conv2d.1} parent=0 // pred_check_branch
    %1632 = sbr.rel (0) target = $region21
  $region20: #{basic_conv2d.1} parent=0 // pred_region
    _
  $region21: #{basic_conv2d.1} parent=0 // pred_fallthru
    _
  // Predicated region
  $region22: #{basic_conv2d.1} parent=0 // pred_check
    _
  $region23: #{basic_conv2d.1} parent=0 // pred_check_branch
    %1634 = sbr.rel (0) target = $region25
  $region24: #{basic_conv2d.1} parent=0 // pred_region
    _
  $region25: #{basic_conv2d.1} parent=0 // pred_fallthru
    _

</llo_original>
